<compile_context>
chip_gen: v6e
topology: v6e:2x2x1
jax: 0.10.0
libtpu: 0.0.40
codegen_flags: <defaults>
</compile_context>

<pallas_src>
import functools

import jax
import jax.numpy as jnp
from jax import lax
from jax.experimental import pallas as pl
from jax.experimental.pallas import tpu as pltpu

PROJECTOR_DIM = 128
CLASS_NUM = 7
QUEUE_SIZE = 150
TEMPERATURE = 0.5
N_QUEUE = QUEUE_SIZE * CLASS_NUM                 # 1050
N_PAD = ((N_QUEUE + 127) // 128) * 128           # 1152 (lane-aligned queue width)


def _pgc_kernel(act_ref, ema_ref, label_ref, q_ref, out_ref, *, batch):
    """Pseudo-group-contrast loss, reduced to a (1,1) scalar.

    act_ref, ema_ref : (Bp, D)     float32
    label_ref        : (Bp, 1)     int32   (argmax of pseudo_label, padded rows 0)
    q_ref            : (Npad, D)   bfloat16 (L2-normalized queue rows; pad rows 0)
    out_ref          : (1, 1)      float32  mean per-sample loss over valid rows
    """
    act = act_ref[...]
    ema = ema_ref[...]
    label = label_ref[...]
    q = q_ref[...]

    inv_t = 1.0 / TEMPERATURE
    # L2 normalize (rsqrt on the EUP); fold 1/T into the activation branch so
    # every logit downstream already carries the temperature scale.
    f = act * (lax.rsqrt(jnp.sum(act * act, axis=1, keepdims=True) + 1e-24) * inv_t)
    ef = ema * lax.rsqrt(jnp.sum(ema * ema, axis=1, keepdims=True) + 1e-24)

    # positive (ema) logit:  <f_hat, ef_hat> / T   -- kept in f32 on the VPU
    l_pos_logit = jnp.sum(f * ef, axis=1, keepdims=True)           # (Bp, 1)
    l_pos = jnp.exp(l_pos_logit)

    # queue logits on the MXU: bf16 inputs, f32 accumulate, rhs contracted on
    # its dim 1 so the (N, D) queue layout is used directly (no transpose).
    sims = lax.dot_general(f.astype(jnp.bfloat16), q,
                           dimension_numbers=(((1,), (1,)), ((), ())),
                           preferred_element_type=jnp.float32)      # (Bp, Npad)

    e = jnp.exp(sims)
    # padded queue columns contribute exp(0) = 1 each; subtract them back out.
    total = jnp.sum(e, axis=1, keepdims=True) - float(N_PAD - N_QUEUE)
    denom = l_pos + total
    log_denom = jnp.log(denom)                                      # (Bp, 1)

    # same-class queue segment mask: two integer compares (no integer divide).
    col = lax.broadcasted_iota(jnp.int32, sims.shape, 1)
    lo = label * QUEUE_SIZE
    pos_mask = (col >= lo) & (col < lo + QUEUE_SIZE)
    pos_logit_sum = jnp.sum(jnp.where(pos_mask, sims, 0.0), axis=1, keepdims=True)

    # log identity:  [(log d - l_pos_logit) + (Q*log d - sum_pos sims)] / (Q+1)
    # (the reference's +1e-8 inside the logs is dropped; every probability is
    #  strictly positive so the difference is ~1e-8.)
    per_row = log_denom - (l_pos_logit + pos_logit_sum) * (1.0 / (QUEUE_SIZE + 1))

    # mask the padded batch rows and reduce to a scalar in-kernel.
    rows = lax.broadcasted_iota(jnp.int32, per_row.shape, 0)
    per_row = jnp.where(rows < batch, per_row, 0.0)
    out_ref[...] = jnp.sum(per_row, axis=0, keepdims=True) * (1.0 / batch)


@jax.jit
def pgc_forward(activation, ema_activation, pseudo_label, queue_list):
    """Returns (pgc_loss, updated_queue_list).

    activation, ema_activation : (B, 128) float32
    pseudo_label               : (B, 7)   float32
    queue_list                 : (1050, 128) float32 (row-normalized)
    """
    B, D = activation.shape
    Bp = ((B + 7) // 8) * 8                  # pad batch to sublane multiple
    pad = Bp - B

    act = jnp.pad(activation.astype(jnp.float32), ((0, pad), (0, 0)))
    ema = jnp.pad(ema_activation.astype(jnp.float32), ((0, pad), (0, 0)))

    labels = jnp.argmax(pseudo_label, axis=1).astype(jnp.int32)      # (B,)
    labels_p = jnp.pad(labels, (0, pad)).reshape(Bp, 1)

    # Queue: cast to bf16 for the MXU and pad N -> lane multiple with zero rows
    # (their exp(0)=1 contribution is subtracted inside the kernel).
    q_bf16 = jnp.pad(queue_list.astype(jnp.bfloat16),
                     ((0, N_PAD - N_QUEUE), (0, 0)))

    vmem = pl.BlockSpec(memory_space=pltpu.MemorySpace.VMEM)
    loss11 = pl.pallas_call(
        functools.partial(_pgc_kernel, batch=B),
        out_shape=jax.ShapeDtypeStruct((1, 1), jnp.float32),
        in_specs=[vmem, vmem, vmem, vmem],
        out_specs=vmem,
    )(act, ema, labels_p, q_bf16)
    pgc_loss = loss11[0, 0]

    # ---- queue update (_dequeue_and_enqueue), plain JAX glue ----------------
    # The PyTorch module mutates self.queue_list in place; here the updated
    # queue is returned functionally. The loss above uses the pre-update queue,
    # matching `current_queue_list = self.queue_list.clone()` semantics.
    ema_norm = ema_activation.astype(jnp.float32)
    ema_norm = ema_norm / jnp.maximum(
        jnp.linalg.norm(ema_norm, axis=1, keepdims=True), 1e-12)

    # TODO(synk): for large B, replace this serial shift-by-one with per-class
    # circular write pointers to avoid O(B*QUEUE_SIZE*D) serialized HBM traffic.
    def enqueue_body(i, q):
        c = labels[i]
        new_row = lax.dynamic_slice(ema_norm, (i, 0), (1, D))
        seg = lax.dynamic_slice(q, (c * QUEUE_SIZE, 0), (QUEUE_SIZE, D))
        new_seg = jnp.concatenate([new_row, seg[:QUEUE_SIZE - 1]], axis=0)
        return lax.dynamic_update_slice(q, new_seg, (c * QUEUE_SIZE, 0))

    new_queue = lax.fori_loop(0, B, enqueue_body, queue_list.astype(jnp.float32))
    return pgc_loss, new_queue


def _reference_loss(activation, ema_activation, pseudo_label, queue_list):
    """Pure-JAX reference mirroring the PyTorch per-sample loop."""
    f = activation / jnp.maximum(
        jnp.linalg.norm(activation, axis=1, keepdims=True), 1e-12)
    ef = ema_activation / jnp.maximum(
        jnp.linalg.norm(ema_activation, axis=1, keepdims=True), 1e-12)
    labels = jnp.argmax(pseudo_label, axis=1)
    l_pos = jnp.exp(jnp.sum(f * ef, axis=1) / TEMPERATURE)
    B = f.shape[0]
    total_loss = 0.0
    for i in range(B):
        c = int(labels[i])
        sims = jnp.exp(queue_list @ f[i] / TEMPERATURE)              # (N,)
        pos = sims[c * QUEUE_SIZE:(c + 1) * QUEUE_SIZE]
        denom = l_pos[i] + jnp.sum(sims)
        terms = jnp.concatenate([l_pos[i:i + 1] / denom, pos / denom])
        total_loss = total_loss + jnp.sum(-jnp.log(terms + 1e-8)) / (QUEUE_SIZE + 1)
    return total_loss / B


if __name__ == "__main__":
    key = jax.random.PRNGKey(0)
    k_q, k_a, k_e, k_p = jax.random.split(key, 4)

    B = 2
    # deterministic "buffer" init: randn then L2-normalize rows (as in __init__)
    queue = jax.random.normal(k_q, (N_QUEUE, PROJECTOR_DIM), dtype=jnp.float32)
    queue = queue / jnp.maximum(jnp.linalg.norm(queue, axis=1, keepdims=True), 1e-12)

    activation = jax.random.normal(k_a, (B, PROJECTOR_DIM), dtype=jnp.float32)
    ema_activation = jax.random.normal(k_e, (B, PROJECTOR_DIM), dtype=jnp.float32)
    pseudo_label = jax.random.normal(k_p, (B, CLASS_NUM), dtype=jnp.float32)

    loss, new_queue = pgc_forward(activation, ema_activation, pseudo_label, queue)
    loss = jax.block_until_ready(loss)
    new_queue = jax.block_until_ready(new_queue)

    # Loss check (bf16 MXU inputs shift the logits at the ~1e-3 level).
    ref = _reference_loss(activation, ema_activation, pseudo_label, queue)
    assert jnp.allclose(loss, ref, rtol=2e-3, atol=2e-3), (loss, ref)

    # Queue-update check against a direct per-sample emulation.
    labels_h = jnp.argmax(pseudo_label, axis=1)
    ema_norm_h = ema_activation / jnp.maximum(
        jnp.linalg.norm(ema_activation, axis=1, keepdims=True), 1e-12)
    q_ref = queue
    for i in range(B):
        c = int(labels_h[i])
        seg = q_ref[c * QUEUE_SIZE:(c + 1) * QUEUE_SIZE]
        seg = jnp.concatenate([ema_norm_h[i:i + 1], seg[:QUEUE_SIZE - 1]], axis=0)
        q_ref = q_ref.at[c * QUEUE_SIZE:(c + 1) * QUEUE_SIZE].set(seg)
    assert jnp.allclose(new_queue, q_ref, rtol=1e-6, atol=1e-6)

    print("KERNEL_OK")
</pallas_src>

<mosaic_0001>
module attributes {stable_mosaic.version = 11 : i64} {
  func.func @_pgc_kernel(%arg0: memref<8x128xf32, #tpu.memory_space<vmem>>, %arg1: memref<8x128xf32, #tpu.memory_space<vmem>>, %arg2: memref<8x1xi32, #tpu.memory_space<vmem>>, %arg3: memref<1152x128xbf16, #tpu.memory_space<vmem>>, %arg4: memref<1x1xf32, #tpu.memory_space<vmem>>) attributes {dimension_semantics = [], scalar_prefetch = 0 : i64, scratch_operands = 0 : i64, tpu.core_type = #tpu.core_type<tc>} {
    %c0 = arith.constant 0 : index
    %c0_0 = arith.constant 0 : index
    %0 = vector.load %arg0[%c0, %c0_0] : memref<8x128xf32, #tpu.memory_space<vmem>>, vector<8x128xf32>
    %c0_1 = arith.constant 0 : index
    %c0_2 = arith.constant 0 : index
    %1 = vector.load %arg1[%c0_1, %c0_2] : memref<8x128xf32, #tpu.memory_space<vmem>>, vector<8x128xf32>
    %c0_3 = arith.constant 0 : index
    %c0_4 = arith.constant 0 : index
    %2 = vector.load %arg2[%c0_3, %c0_4] : memref<8x1xi32, #tpu.memory_space<vmem>>, vector<8x1xi32>
    %c0_5 = arith.constant 0 : index
    %c0_6 = arith.constant 0 : index
    %3 = vector.load %arg3[%c0_5, %c0_6] : memref<1152x128xbf16, #tpu.memory_space<vmem>>, vector<1152x128xbf16>
    %4 = arith.mulf %0, %0 : vector<8x128xf32>
    %cst = arith.constant dense<0.000000e+00> : vector<8xf32>
    %5 = vector.multi_reduction <add>, %4, %cst [1] : vector<8x128xf32> to vector<8xf32>
    %6 = vector.shape_cast %5 : vector<8xf32> to vector<8x1xf32>
    %cst_7 = arith.constant 1.000000e-24 : f32
    %7 = vector.broadcast %cst_7 : f32 to vector<8x1xf32>
    %8 = arith.addf %6, %7 : vector<8x1xf32>
    %9 = math.rsqrt %8 : vector<8x1xf32>
    %cst_8 = arith.constant 2.000000e+00 : f32
    %10 = vector.broadcast %cst_8 : f32 to vector<8x1xf32>
    %11 = arith.mulf %9, %10 : vector<8x1xf32>
    %12 = vector.broadcast %11 : vector<8x1xf32> to vector<8x128xf32>
    %13 = arith.mulf %0, %12 : vector<8x128xf32>
    %14 = arith.mulf %1, %1 : vector<8x128xf32>
    %cst_9 = arith.constant dense<0.000000e+00> : vector<8xf32>
    %15 = vector.multi_reduction <add>, %14, %cst_9 [1] : vector<8x128xf32> to vector<8xf32>
    %16 = vector.shape_cast %15 : vector<8xf32> to vector<8x1xf32>
    %cst_10 = arith.constant 1.000000e-24 : f32
    %17 = vector.broadcast %cst_10 : f32 to vector<8x1xf32>
    %18 = arith.addf %16, %17 : vector<8x1xf32>
    %19 = math.rsqrt %18 : vector<8x1xf32>
    %20 = vector.broadcast %19 : vector<8x1xf32> to vector<8x128xf32>
    %21 = arith.mulf %1, %20 : vector<8x128xf32>
    %22 = arith.mulf %13, %21 : vector<8x128xf32>
    %cst_11 = arith.constant dense<0.000000e+00> : vector<8xf32>
    %23 = vector.multi_reduction <add>, %22, %cst_11 [1] : vector<8x128xf32> to vector<8xf32>
    %24 = vector.shape_cast %23 : vector<8xf32> to vector<8x1xf32>
    %25 = math.exp %24 : vector<8x1xf32>
    %26 = arith.truncf %13 : vector<8x128xf32> to vector<8x128xbf16>
    %cst_12 = arith.constant dense<0.000000e+00> : vector<8x1152xf32>
    %27 = tpu.matmul %26, %3, %cst_12 {dimension_numbers = #tpu.dot_dimension_numbers<[1], [1], [0], [0], [0, 0, 1, 0], [], []>} : vector<8x128xbf16>, vector<1152x128xbf16>, vector<8x1152xf32> -> vector<8x1152xf32>
    %28 = math.exp %27 : vector<8x1152xf32>
    %cst_13 = arith.constant dense<0.000000e+00> : vector<8xf32>
    %29 = vector.multi_reduction <add>, %28, %cst_13 [1] : vector<8x1152xf32> to vector<8xf32>
    %30 = vector.shape_cast %29 : vector<8xf32> to vector<8x1xf32>
    %cst_14 = arith.constant 1.020000e+02 : f32
    %31 = vector.broadcast %cst_14 : f32 to vector<8x1xf32>
    %32 = arith.subf %30, %31 : vector<8x1xf32>
    %33 = arith.addf %25, %32 : vector<8x1xf32>
    %34 = math.log %33 : vector<8x1xf32>
    %35 = tpu.iota {dimensions = array<i32: 1>} : vector<8x1152xi32>
    %c150_i32 = arith.constant 150 : i32
    %36 = vector.broadcast %c150_i32 : i32 to vector<8x1xi32>
    %37 = arith.muli %2, %36 : vector<8x1xi32>
    %38 = vector.broadcast %37 : vector<8x1xi32> to vector<8x1152xi32>
    %39 = arith.cmpi sge, %35, %38 : vector<8x1152xi32>
    %c150_i32_15 = arith.constant 150 : i32
    %40 = vector.broadcast %c150_i32_15 : i32 to vector<8x1xi32>
    %41 = arith.addi %37, %40 : vector<8x1xi32>
    %42 = vector.broadcast %41 : vector<8x1xi32> to vector<8x1152xi32>
    %43 = arith.cmpi slt, %35, %42 : vector<8x1152xi32>
    %44 = arith.andi %39, %43 : vector<8x1152xi1>
    %cst_16 = arith.constant 0.000000e+00 : f32
    %45 = vector.broadcast %cst_16 : f32 to vector<8x1152xf32>
    %46 = arith.select %44, %27, %45 : vector<8x1152xi1>, vector<8x1152xf32>
    %cst_17 = arith.constant dense<0.000000e+00> : vector<8xf32>
    %47 = vector.multi_reduction <add>, %46, %cst_17 [1] : vector<8x1152xf32> to vector<8xf32>
    %48 = vector.shape_cast %47 : vector<8xf32> to vector<8x1xf32>
    %49 = arith.addf %24, %48 : vector<8x1xf32>
    %cst_18 = arith.constant 0.00662251655 : f32
    %50 = vector.broadcast %cst_18 : f32 to vector<8x1xf32>
    %51 = arith.mulf %49, %50 : vector<8x1xf32>
    %52 = arith.subf %34, %51 : vector<8x1xf32>
    %53 = tpu.iota {dimensions = array<i32: 0>} : vector<8x1xi32>
    %c2_i32 = arith.constant 2 : i32
    %54 = vector.broadcast %c2_i32 : i32 to vector<8x1xi32>
    %55 = arith.cmpi slt, %53, %54 : vector<8x1xi32>
    %cst_19 = arith.constant 0.000000e+00 : f32
    %56 = vector.broadcast %cst_19 : f32 to vector<8x1xf32>
    %57 = arith.select %55, %52, %56 : vector<8x1xi1>, vector<8x1xf32>
    %cst_20 = arith.constant dense<0.000000e+00> : vector<1xf32>
    %58 = vector.multi_reduction <add>, %57, %cst_20 [0] : vector<8x1xf32> to vector<1xf32>
    %59 = vector.shape_cast %58 : vector<1xf32> to vector<1x1xf32>
    %cst_21 = arith.constant 5.000000e-01 : f32
    %60 = vector.broadcast %cst_21 : f32 to vector<1x1xf32>
    %61 = arith.mulf %59, %60 : vector<1x1xf32>
    %c0_22 = arith.constant 0 : index
    %c0_23 = arith.constant 0 : index
    %62 = vector.load %arg4[%c0_22, %c0_23] : memref<1x1xf32, #tpu.memory_space<vmem>>, vector<1x1xf32>
    tpu.vector_store %arg4[%c0_22, %c0_23], %61 {strides = array<i32>} : memref<1x1xf32, #tpu.memory_space<vmem>>, vector<1x1xf32>,
    return
  }
}

</mosaic_0001>

<llo_original>
// kernel: pgc_forward.1
$region0: #{pgc_forward.1}
  #allocation0 [shape = 'u32[]', space=smem, size = 0x4, offset = 0x4, fixed_abs, tag = 'smem constant byte address 0x4 - core index']
  #allocation1 [shape = 'u32[144,128]{1,0:T(1,128)}', space=vmem, size = 0x12000, scoped, tag = 'internal scratch']
  %s0 = inlined_call_operand.vmem [shape: f32[8,128], index: 0, kind: input, shape index: {}]
  %s1 = inlined_call_operand.vmem [shape: f32[8,128], index: 1, kind: input, shape index: {}]
  %s2 = inlined_call_operand.vmem [shape: s32[8,1], index: 2, kind: input, shape index: {}]
  %s3 = inlined_call_operand.vmem [shape: bf16[1152,128], index: 3, kind: input, shape index: {}]
  %s4 = inlined_call_operand.hbm [shape: f32[1,1], index: 4, kind: output, shape index: {}]
  %s5 = sld [smem:[#allocation0]]
  $region26: #{pgc_forward.1} parent=0
    _
  %s7 = ssub.s32 1, %s5
  %s8 = scalar_select 0, %s7, %s5
  $region1: #{pgc_forward.1} parent=0
    #allocation2 [shape = 'u8[512]{0}', space=vmem, size = 0x400, scoped, tag = 'output window, operand 0, single buffered']
    #allocation3 [shape = 's32[1]{0}', space=sflag, size = 0x4, scoped, tag = 'scoped memory for pgc_forward.1']
    %9 = vsyncpa [#allocation3], 0
    // Predicated region
    $region2: #{pgc_forward.1} parent=1 // pred_check
      _
    $region3: #{pgc_forward.1} parent=1 // pred_check_branch
      %11 = sbr.rel (0) target = $region5
    $region4: #{pgc_forward.1} parent=1 // pred_region
      _
    $region5: #{pgc_forward.1} parent=1 // pred_fallthru
      _
    // Predicated region
    $region6: #{pgc_forward.1} parent=1 // pred_check
      _
    $region7: #{pgc_forward.1} parent=1 // pred_check_branch
      %13 = sbr.rel (0) target = $region9
    $region8: #{pgc_forward.1} parent=1 // pred_region
      _
    $region9: #{pgc_forward.1} parent=1 // pred_fallthru
      _
    // Predicated region
    $region10: #{pgc_forward.1} parent=1 // pred_check
      _
    $region11: #{pgc_forward.1} parent=1 // pred_check_branch
      %15 = sbr.rel (0) target = $region13
    $region12: #{pgc_forward.1} parent=1 // pred_region
      _
    $region13: #{pgc_forward.1} parent=1 // pred_fallthru
      _
    // Predicated region
    $region14: #{pgc_forward.1} parent=1 // pred_check
      _
    $region15: #{pgc_forward.1} parent=1 // pred_check_branch
      %17 = sbr.rel (0) target = $region17
    $region16: #{pgc_forward.1} parent=1 // pred_region
      _
    $region17: #{pgc_forward.1} parent=1 // pred_fallthru
      _
    %v19 = vld [vmem:[%s0] sm:$0xff]
    %v20 = vld [vmem:[%s1] sm:$0xff]
    %v21 = vld [vmem:[%s2] sm:$0xff]
    %v22 = vld [vmem:[%s3] sm:$0xf]
    %v23 = vld [vmem:[%s3 + $0x4] sm:$0xf]
    %v24 = vld [vmem:[%s3 + $0x8] sm:$0xf]
    %v25 = vld [vmem:[%s3 + $0xc] sm:$0xf]
    %v26 = vld [vmem:[%s3 + $0x10] sm:$0xf]
    %v27 = vld [vmem:[%s3 + $0x14] sm:$0xf]
    %v28 = vld [vmem:[%s3 + $0x18] sm:$0xf]
    %v29 = vld [vmem:[%s3 + $0x1c] sm:$0xf]
    %v30 = vld [vmem:[%s3 + $0x20] sm:$0xf]
    %v31 = vld [vmem:[%s3 + $0x24] sm:$0xf]
    %v32 = vld [vmem:[%s3 + $0x28] sm:$0xf]
    %v33 = vld [vmem:[%s3 + $0x2c] sm:$0xf]
    %v34 = vld [vmem:[%s3 + $0x30] sm:$0xf]
    %v35 = vld [vmem:[%s3 + $0x34] sm:$0xf]
    %v36 = vld [vmem:[%s3 + $0x38] sm:$0xf]
    %v37 = vld [vmem:[%s3 + $0x3c] sm:$0xf]
    %v38 = vld [vmem:[%s3 + $0x40] sm:$0xf]
    %v39 = vld [vmem:[%s3 + $0x44] sm:$0xf]
    %v40 = vld [vmem:[%s3 + $0x48] sm:$0xf]
    %v41 = vld [vmem:[%s3 + $0x4c] sm:$0xf]
    %v42 = vld [vmem:[%s3 + $0x50] sm:$0xf]
    %v43 = vld [vmem:[%s3 + $0x54] sm:$0xf]
    %v44 = vld [vmem:[%s3 + $0x58] sm:$0xf]
    %v45 = vld [vmem:[%s3 + $0x5c] sm:$0xf]
    %v46 = vld [vmem:[%s3 + $0x60] sm:$0xf]
    %v47 = vld [vmem:[%s3 + $0x64] sm:$0xf]
    %v48 = vld [vmem:[%s3 + $0x68] sm:$0xf]
    %v49 = vld [vmem:[%s3 + $0x6c] sm:$0xf]
    %v50 = vld [vmem:[%s3 + $0x70] sm:$0xf]
    %v51 = vld [vmem:[%s3 + $0x74] sm:$0xf]
    %v52 = vld [vmem:[%s3 + $0x78] sm:$0xf]
    %v53 = vld [vmem:[%s3 + $0x7c] sm:$0xf]
    %v54 = vld [vmem:[%s3 + $0x80] sm:$0xf]
    %v55 = vld [vmem:[%s3 + $0x84] sm:$0xf]
    %v56 = vld [vmem:[%s3 + $0x88] sm:$0xf]
    %v57 = vld [vmem:[%s3 + $0x8c] sm:$0xf]
    %v58 = vld [vmem:[%s3 + $0x90] sm:$0xf]
    %v59 = vld [vmem:[%s3 + $0x94] sm:$0xf]
    %v60 = vld [vmem:[%s3 + $0x98] sm:$0xf]
    %v61 = vld [vmem:[%s3 + $0x9c] sm:$0xf]
    %v62 = vld [vmem:[%s3 + $0xa0] sm:$0xf]
    %v63 = vld [vmem:[%s3 + $0xa4] sm:$0xf]
    %v64 = vld [vmem:[%s3 + $0xa8] sm:$0xf]
    %v65 = vld [vmem:[%s3 + $0xac] sm:$0xf]
    %v66 = vld [vmem:[%s3 + $0xb0] sm:$0xf]
    %v67 = vld [vmem:[%s3 + $0xb4] sm:$0xf]
    %v68 = vld [vmem:[%s3 + $0xb8] sm:$0xf]
    %v69 = vld [vmem:[%s3 + $0xbc] sm:$0xf]
    %v70 = vld [vmem:[%s3 + $0xc0] sm:$0xf]
    %v71 = vld [vmem:[%s3 + $0xc4] sm:$0xf]
    %v72 = vld [vmem:[%s3 + $0xc8] sm:$0xf]
    %v73 = vld [vmem:[%s3 + $0xcc] sm:$0xf]
    %v74 = vld [vmem:[%s3 + $0xd0] sm:$0xf]
    %v75 = vld [vmem:[%s3 + $0xd4] sm:$0xf]
    %v76 = vld [vmem:[%s3 + $0xd8] sm:$0xf]
    %v77 = vld [vmem:[%s3 + $0xdc] sm:$0xf]
    %v78 = vld [vmem:[%s3 + $0xe0] sm:$0xf]
    %v79 = vld [vmem:[%s3 + $0xe4] sm:$0xf]
    %v80 = vld [vmem:[%s3 + $0xe8] sm:$0xf]
    %v81 = vld [vmem:[%s3 + $0xec] sm:$0xf]
    %v82 = vld [vmem:[%s3 + $0xf0] sm:$0xf]
    %v83 = vld [vmem:[%s3 + $0xf4] sm:$0xf]
    %v84 = vld [vmem:[%s3 + $0xf8] sm:$0xf]
    %v85 = vld [vmem:[%s3 + $0xfc] sm:$0xf]
    %v86 = vld [vmem:[%s3 + $0x100] sm:$0xf]
    %v87 = vld [vmem:[%s3 + $0x104] sm:$0xf]
    %v88 = vld [vmem:[%s3 + $0x108] sm:$0xf]
    %v89 = vld [vmem:[%s3 + $0x10c] sm:$0xf]
    %v90 = vld [vmem:[%s3 + $0x110] sm:$0xf]
    %v91 = vld [vmem:[%s3 + $0x114] sm:$0xf]
    %v92 = vld [vmem:[%s3 + $0x118] sm:$0xf]
    %v93 = vld [vmem:[%s3 + $0x11c] sm:$0xf]
    %v94 = vld [vmem:[%s3 + $0x120] sm:$0xf]
    %v95 = vld [vmem:[%s3 + $0x124] sm:$0xf]
    %v96 = vld [vmem:[%s3 + $0x128] sm:$0xf]
    %v97 = vld [vmem:[%s3 + $0x12c] sm:$0xf]
    %v98 = vld [vmem:[%s3 + $0x130] sm:$0xf]
    %v99 = vld [vmem:[%s3 + $0x134] sm:$0xf]
    %v100 = vld [vmem:[%s3 + $0x138] sm:$0xf]
    %v101 = vld [vmem:[%s3 + $0x13c] sm:$0xf]
    %v102 = vld [vmem:[%s3 + $0x140] sm:$0xf]
    %v103 = vld [vmem:[%s3 + $0x144] sm:$0xf]
    %v104 = vld [vmem:[%s3 + $0x148] sm:$0xf]
    %v105 = vld [vmem:[%s3 + $0x14c] sm:$0xf]
    %v106 = vld [vmem:[%s3 + $0x150] sm:$0xf]
    %v107 = vld [vmem:[%s3 + $0x154] sm:$0xf]
    %v108 = vld [vmem:[%s3 + $0x158] sm:$0xf]
    %v109 = vld [vmem:[%s3 + $0x15c] sm:$0xf]
    %v110 = vld [vmem:[%s3 + $0x160] sm:$0xf]
    %v111 = vld [vmem:[%s3 + $0x164] sm:$0xf]
    %v112 = vld [vmem:[%s3 + $0x168] sm:$0xf]
    %v113 = vld [vmem:[%s3 + $0x16c] sm:$0xf]
    %v114 = vld [vmem:[%s3 + $0x170] sm:$0xf]
    %v115 = vld [vmem:[%s3 + $0x174] sm:$0xf]
    %v116 = vld [vmem:[%s3 + $0x178] sm:$0xf]
    %v117 = vld [vmem:[%s3 + $0x17c] sm:$0xf]
    %v118 = vld [vmem:[%s3 + $0x180] sm:$0xf]
    %v119 = vld [vmem:[%s3 + $0x184] sm:$0xf]
    %v120 = vld [vmem:[%s3 + $0x188] sm:$0xf]
    %v121 = vld [vmem:[%s3 + $0x18c] sm:$0xf]
    %v122 = vld [vmem:[%s3 + $0x190] sm:$0xf]
    %v123 = vld [vmem:[%s3 + $0x194] sm:$0xf]
    %v124 = vld [vmem:[%s3 + $0x198] sm:$0xf]
    %v125 = vld [vmem:[%s3 + $0x19c] sm:$0xf]
    %v126 = vld [vmem:[%s3 + $0x1a0] sm:$0xf]
    %v127 = vld [vmem:[%s3 + $0x1a4] sm:$0xf]
    %v128 = vld [vmem:[%s3 + $0x1a8] sm:$0xf]
    %v129 = vld [vmem:[%s3 + $0x1ac] sm:$0xf]
    %v130 = vld [vmem:[%s3 + $0x1b0] sm:$0xf]
    %v131 = vld [vmem:[%s3 + $0x1b4] sm:$0xf]
    %v132 = vld [vmem:[%s3 + $0x1b8] sm:$0xf]
    %v133 = vld [vmem:[%s3 + $0x1bc] sm:$0xf]
    %v134 = vld [vmem:[%s3 + $0x1c0] sm:$0xf]
    %v135 = vld [vmem:[%s3 + $0x1c4] sm:$0xf]
    %v136 = vld [vmem:[%s3 + $0x1c8] sm:$0xf]
    %v137 = vld [vmem:[%s3 + $0x1cc] sm:$0xf]
    %v138 = vld [vmem:[%s3 + $0x1d0] sm:$0xf]
    %v139 = vld [vmem:[%s3 + $0x1d4] sm:$0xf]
    %v140 = vld [vmem:[%s3 + $0x1d8] sm:$0xf]
    %v141 = vld [vmem:[%s3 + $0x1dc] sm:$0xf]
    %v142 = vld [vmem:[%s3 + $0x1e0] sm:$0xf]
    %v143 = vld [vmem:[%s3 + $0x1e4] sm:$0xf]
    %v144 = vld [vmem:[%s3 + $0x1e8] sm:$0xf]
    %v145 = vld [vmem:[%s3 + $0x1ec] sm:$0xf]
    %v146 = vld [vmem:[%s3 + $0x1f0] sm:$0xf]
    %v147 = vld [vmem:[%s3 + $0x1f4] sm:$0xf]
    %v148 = vld [vmem:[%s3 + $0x1f8] sm:$0xf]
    %v149 = vld [vmem:[%s3 + $0x1fc] sm:$0xf]
    %v150 = vld [vmem:[%s3 + $0x200] sm:$0xf]
    %v151 = vld [vmem:[%s3 + $0x204] sm:$0xf]
    %v152 = vld [vmem:[%s3 + $0x208] sm:$0xf]
    %v153 = vld [vmem:[%s3 + $0x20c] sm:$0xf]
    %v154 = vld [vmem:[%s3 + $0x210] sm:$0xf]
    %v155 = vld [vmem:[%s3 + $0x214] sm:$0xf]
    %v156 = vld [vmem:[%s3 + $0x218] sm:$0xf]
    %v157 = vld [vmem:[%s3 + $0x21c] sm:$0xf]
    %v158 = vld [vmem:[%s3 + $0x220] sm:$0xf]
    %v159 = vld [vmem:[%s3 + $0x224] sm:$0xf]
    %v160 = vld [vmem:[%s3 + $0x228] sm:$0xf]
    %v161 = vld [vmem:[%s3 + $0x22c] sm:$0xf]
    %v162 = vld [vmem:[%s3 + $0x230] sm:$0xf]
    %v163 = vld [vmem:[%s3 + $0x234] sm:$0xf]
    %v164 = vld [vmem:[%s3 + $0x238] sm:$0xf]
    %v165 = vld [vmem:[%s3 + $0x23c] sm:$0xf]
    %v166 = vmul.f32 %v19, %v19
    %167 = vadd.xlane.f32.xlu0 %v166
    %v168 = vpop.xlane.xlu0 %167
    %v169 = vadd.f32 %v168, 1e-24
    %v170 = vrsqrt.pop %v169
    %v171 = vmul.f32 %v170, 2.0
    %v172 = vmul.f32 %v19, %v171
    %v173 = vmul.f32 %v20, %v20
    %174 = vadd.xlane.f32.xlu0 %v173
    %v175 = vpop.xlane.xlu0 %174
    %v176 = vadd.f32 %v175, 1e-24
    %v177 = vrsqrt.pop %v176
    %v178 = vmul.f32 %v20, %v177
    %v179 = vmul.f32 %v172, %v178
    %180 = vadd.xlane.f32.xlu0 %v179
    %v181 = vpop.xlane.xlu0 %180
    %v182 = vmul.f32 %v181, 1.442695
    %v183 = vpow.pop %v182
    %v184 = vpack.c.bf16 %v172, %v172
    %v329 = vunpack.c.l.b16 %v22
    %v330 = vunpack.c.l.b16 %v23
    %v331 = vunpack.c.l.b16 %v24
    %v332 = vunpack.c.l.b16 %v25
    %v333 = vunpack.c.l.b16 %v26
    %v334 = vunpack.c.l.b16 %v27
    %v335 = vunpack.c.l.b16 %v28
    %v336 = vunpack.c.l.b16 %v29
    %v337 = vunpack.c.l.b16 %v30
    %v338 = vunpack.c.l.b16 %v31
    %v339 = vunpack.c.l.b16 %v32
    %v340 = vunpack.c.l.b16 %v33
    %v341 = vunpack.c.l.b16 %v34
    %v342 = vunpack.c.l.b16 %v35
    %v343 = vunpack.c.l.b16 %v36
    %v344 = vunpack.c.l.b16 %v37
    %v345 = vunpack.c.l.b16 %v38
    %v346 = vunpack.c.l.b16 %v39
    %v347 = vunpack.c.l.b16 %v40
    %v348 = vunpack.c.l.b16 %v41
    %v349 = vunpack.c.l.b16 %v42
    %v350 = vunpack.c.l.b16 %v43
    %v351 = vunpack.c.l.b16 %v44
    %v352 = vunpack.c.l.b16 %v45
    %v353 = vunpack.c.l.b16 %v46
    %v354 = vunpack.c.l.b16 %v47
    %v355 = vunpack.c.l.b16 %v48
    %v356 = vunpack.c.l.b16 %v49
    %v357 = vunpack.c.l.b16 %v50
    %v358 = vunpack.c.l.b16 %v51
    %v359 = vunpack.c.l.b16 %v52
    %v360 = vunpack.c.l.b16 %v53
    %v361 = vunpack.c.l.b16 %v54
    %v362 = vunpack.c.l.b16 %v55
    %v363 = vunpack.c.l.b16 %v56
    %v364 = vunpack.c.l.b16 %v57
    %v365 = vunpack.c.l.b16 %v58
    %v366 = vunpack.c.l.b16 %v59
    %v367 = vunpack.c.l.b16 %v60
    %v368 = vunpack.c.l.b16 %v61
    %v369 = vunpack.c.l.b16 %v62
    %v370 = vunpack.c.l.b16 %v63
    %v371 = vunpack.c.l.b16 %v64
    %v372 = vunpack.c.l.b16 %v65
    %v373 = vunpack.c.l.b16 %v66
    %v374 = vunpack.c.l.b16 %v67
    %v375 = vunpack.c.l.b16 %v68
    %v376 = vunpack.c.l.b16 %v69
    %v377 = vunpack.c.l.b16 %v70
    %v378 = vunpack.c.l.b16 %v71
    %v379 = vunpack.c.l.b16 %v72
    %v380 = vunpack.c.l.b16 %v73
    %v381 = vunpack.c.l.b16 %v74
    %v382 = vunpack.c.l.b16 %v75
    %v383 = vunpack.c.l.b16 %v76
    %v384 = vunpack.c.l.b16 %v77
    %v385 = vunpack.c.l.b16 %v78
    %v386 = vunpack.c.l.b16 %v79
    %v387 = vunpack.c.l.b16 %v80
    %v388 = vunpack.c.l.b16 %v81
    %v389 = vunpack.c.l.b16 %v82
    %v390 = vunpack.c.l.b16 %v83
    %v391 = vunpack.c.l.b16 %v84
    %v392 = vunpack.c.l.b16 %v85
    %v393 = vunpack.c.l.b16 %v86
    %v394 = vunpack.c.l.b16 %v87
    %v395 = vunpack.c.l.b16 %v88
    %v396 = vunpack.c.l.b16 %v89
    %v397 = vunpack.c.l.b16 %v90
    %v398 = vunpack.c.l.b16 %v91
    %v399 = vunpack.c.l.b16 %v92
    %v400 = vunpack.c.l.b16 %v93
    %v401 = vunpack.c.l.b16 %v94
    %v402 = vunpack.c.l.b16 %v95
    %v403 = vunpack.c.l.b16 %v96
    %v404 = vunpack.c.l.b16 %v97
    %v405 = vunpack.c.l.b16 %v98
    %v406 = vunpack.c.l.b16 %v99
    %v407 = vunpack.c.l.b16 %v100
    %v408 = vunpack.c.l.b16 %v101
    %v409 = vunpack.c.l.b16 %v102
    %v410 = vunpack.c.l.b16 %v103
    %v411 = vunpack.c.l.b16 %v104
    %v412 = vunpack.c.l.b16 %v105
    %v413 = vunpack.c.l.b16 %v106
    %v414 = vunpack.c.l.b16 %v107
    %v415 = vunpack.c.l.b16 %v108
    %v416 = vunpack.c.l.b16 %v109
    %v417 = vunpack.c.l.b16 %v110
    %v418 = vunpack.c.l.b16 %v111
    %v419 = vunpack.c.l.b16 %v112
    %v420 = vunpack.c.l.b16 %v113
    %v421 = vunpack.c.l.b16 %v114
    %v422 = vunpack.c.l.b16 %v115
    %v423 = vunpack.c.l.b16 %v116
    %v424 = vunpack.c.l.b16 %v117
    %v425 = vunpack.c.l.b16 %v118
    %v426 = vunpack.c.l.b16 %v119
    %v427 = vunpack.c.l.b16 %v120
    %v428 = vunpack.c.l.b16 %v121
    %v429 = vunpack.c.l.b16 %v122
    %v430 = vunpack.c.l.b16 %v123
    %v431 = vunpack.c.l.b16 %v124
    %v432 = vunpack.c.l.b16 %v125
    %v433 = vunpack.c.l.b16 %v126
    %v434 = vunpack.c.l.b16 %v127
    %v435 = vunpack.c.l.b16 %v128
    %v436 = vunpack.c.l.b16 %v129
    %v437 = vunpack.c.l.b16 %v130
    %v438 = vunpack.c.l.b16 %v131
    %v439 = vunpack.c.l.b16 %v132
    %v440 = vunpack.c.l.b16 %v133
    %v441 = vunpack.c.l.b16 %v134
    %v442 = vunpack.c.l.b16 %v135
    %v443 = vunpack.c.l.b16 %v136
    %v444 = vunpack.c.l.b16 %v137
    %v445 = vunpack.c.l.b16 %v138
    %v446 = vunpack.c.l.b16 %v139
    %v447 = vunpack.c.l.b16 %v140
    %v448 = vunpack.c.l.b16 %v141
    %v449 = vunpack.c.l.b16 %v142
    %v450 = vunpack.c.l.b16 %v143
    %v451 = vunpack.c.l.b16 %v144
    %v452 = vunpack.c.l.b16 %v145
    %v453 = vunpack.c.l.b16 %v146
    %v454 = vunpack.c.l.b16 %v147
    %v455 = vunpack.c.l.b16 %v148
    %v456 = vunpack.c.l.b16 %v149
    %v457 = vunpack.c.l.b16 %v150
    %v458 = vunpack.c.l.b16 %v151
    %v459 = vunpack.c.l.b16 %v152
    %v460 = vunpack.c.l.b16 %v153
    %v461 = vunpack.c.l.b16 %v154
    %v462 = vunpack.c.l.b16 %v155
    %v463 = vunpack.c.l.b16 %v156
    %v464 = vunpack.c.l.b16 %v157
    %v465 = vunpack.c.l.b16 %v158
    %v466 = vunpack.c.l.b16 %v159
    %v467 = vunpack.c.l.b16 %v160
    %v468 = vunpack.c.l.b16 %v161
    %v469 = vunpack.c.l.b16 %v162
    %v470 = vunpack.c.l.b16 %v163
    %v471 = vunpack.c.l.b16 %v164
    %v472 = vunpack.c.l.b16 %v165
    %v473 = vpack.c.b16 %v330, %v329
    %v474 = vpack.c.b16 %v332, %v331
    %v475 = vpack.c.b16 %v334, %v333
    %v476 = vpack.c.b16 %v336, %v335
    %v477 = vpack.c.b16 %v338, %v337
    %v478 = vpack.c.b16 %v340, %v339
    %v479 = vpack.c.b16 %v342, %v341
    %v480 = vpack.c.b16 %v344, %v343
    %v481 = vpack.c.b16 %v346, %v345
    %v482 = vpack.c.b16 %v348, %v347
    %v483 = vpack.c.b16 %v350, %v349
    %v484 = vpack.c.b16 %v352, %v351
    %v485 = vpack.c.b16 %v354, %v353
    %v486 = vpack.c.b16 %v356, %v355
    %v487 = vpack.c.b16 %v358, %v357
    %v488 = vpack.c.b16 %v360, %v359
    %v489 = vpack.c.b16 %v362, %v361
    %v490 = vpack.c.b16 %v364, %v363
    %v491 = vpack.c.b16 %v366, %v365
    %v492 = vpack.c.b16 %v368, %v367
    %v493 = vpack.c.b16 %v370, %v369
    %v494 = vpack.c.b16 %v372, %v371
    %v495 = vpack.c.b16 %v374, %v373
    %v496 = vpack.c.b16 %v376, %v375
    %v497 = vpack.c.b16 %v378, %v377
    %v498 = vpack.c.b16 %v380, %v379
    %v499 = vpack.c.b16 %v382, %v381
    %v500 = vpack.c.b16 %v384, %v383
    %v501 = vpack.c.b16 %v386, %v385
    %v502 = vpack.c.b16 %v388, %v387
    %v503 = vpack.c.b16 %v390, %v389
    %v504 = vpack.c.b16 %v392, %v391
    %v505 = vpack.c.b16 %v394, %v393
    %v506 = vpack.c.b16 %v396, %v395
    %v507 = vpack.c.b16 %v398, %v397
    %v508 = vpack.c.b16 %v400, %v399
    %v509 = vpack.c.b16 %v402, %v401
    %v510 = vpack.c.b16 %v404, %v403
    %v511 = vpack.c.b16 %v406, %v405
    %v512 = vpack.c.b16 %v408, %v407
    %v513 = vpack.c.b16 %v410, %v409
    %v514 = vpack.c.b16 %v412, %v411
    %v515 = vpack.c.b16 %v414, %v413
    %v516 = vpack.c.b16 %v416, %v415
    %v517 = vpack.c.b16 %v418, %v417
    %v518 = vpack.c.b16 %v420, %v419
    %v519 = vpack.c.b16 %v422, %v421
    %v520 = vpack.c.b16 %v424, %v423
    %v521 = vpack.c.b16 %v426, %v425
    %v522 = vpack.c.b16 %v428, %v427
    %v523 = vpack.c.b16 %v430, %v429
    %v524 = vpack.c.b16 %v432, %v431
    %v525 = vpack.c.b16 %v434, %v433
    %v526 = vpack.c.b16 %v436, %v435
    %v527 = vpack.c.b16 %v438, %v437
    %v528 = vpack.c.b16 %v440, %v439
    %v529 = vpack.c.b16 %v442, %v441
    %v530 = vpack.c.b16 %v444, %v443
    %v531 = vpack.c.b16 %v446, %v445
    %v532 = vpack.c.b16 %v448, %v447
    %v533 = vpack.c.b16 %v450, %v449
    %v534 = vpack.c.b16 %v452, %v451
    %v535 = vpack.c.b16 %v454, %v453
    %v536 = vpack.c.b16 %v456, %v455
    %v537 = vpack.c.b16 %v458, %v457
    %v538 = vpack.c.b16 %v460, %v459
    %v539 = vpack.c.b16 %v462, %v461
    %v540 = vpack.c.b16 %v464, %v463
    %v541 = vpack.c.b16 %v466, %v465
    %v542 = vpack.c.b16 %v468, %v467
    %v543 = vpack.c.b16 %v470, %v469
    %v544 = vpack.c.b16 %v472, %v471
    %617 = vmatprep.subr.bf16.mxu0 0
    %618 = vmatpush1.bf16.xpose.msra.mxu0 %v480
    %619 = vmatprep.subr.bf16.mxu0 0
    %620 = vmatpush1.bf16.xpose.msra.mxu0 %v479
    %621 = vmatprep.subr.bf16.mxu0 0
    %622 = vmatpush1.bf16.xpose.msra.mxu0 %v478
    %623 = vmatprep.subr.bf16.mxu0 0
    %624 = vmatpush1.bf16.xpose.msra.mxu0 %v477
    %625 = vmatprep.subr.bf16.mxu0 0
    %626 = vmatpush1.bf16.xpose.msra.mxu0 %v476
    %627 = vmatprep.subr.bf16.mxu0 0
    %628 = vmatpush1.bf16.xpose.msra.mxu0 %v475
    %629 = vmatprep.subr.bf16.mxu0 0
    %630 = vmatpush1.bf16.xpose.msra.mxu0 %v474
    %631 = vmatprep.subr.bf16.mxu0 0
    %632 = vmatpush1.bf16.xpose.msra.mxu0 %v473
    %633 = vmatprep.subr.bf16.mxu0 0
    %634 = vmatpush2.bf16.xpose.msra.mxu0 %v488
    %635 = vmatprep.subr.bf16.mxu0 0
    %636 = vmatpush2.bf16.xpose.msra.mxu0 %v487
    %637 = vmatprep.subr.bf16.mxu0 0
    %638 = vmatpush2.bf16.xpose.msra.mxu0 %v486
    %639 = vmatprep.subr.bf16.mxu0 0
    %640 = vmatpush2.bf16.xpose.msra.mxu0 %v485
    %641 = vmatprep.subr.bf16.mxu0 0
    %642 = vmatpush2.bf16.xpose.msra.mxu0 %v484
    %643 = vmatprep.subr.bf16.mxu0 0
    %644 = vmatpush2.bf16.xpose.msra.mxu0 %v483
    %645 = vmatprep.subr.bf16.mxu0 0
    %646 = vmatpush2.bf16.xpose.msra.mxu0 %v482
    %647 = vmatprep.subr.bf16.mxu0 0
    %648 = vmatpush2.bf16.xpose.msra.mxu0 %v481
    %649 = vmatprep.mubr.bf16.mxu0 0
    %650 = vmatmul.mubr.bf16.gmra.mxu0 %v184
    %v651 = vpop.f32.mrf.mxu0
    %v652 = vadd.f32 0.0, %v651
    %v653 = vpop.f32.mrf.mxu0
    %v654 = vadd.f32 0.0, %v653
    %v655 = vpop.f32.mrf.mxu0
    %v656 = vpop.f32.mrf.mxu0
    %657 = vdwg.mxu0
    %658 = vmatprep.subr.bf16.mxu0 0
    %659 = vmatpush1.bf16.xpose.msra.mxu0 %v496
    %660 = vmatprep.subr.bf16.mxu0 0
    %661 = vmatpush1.bf16.xpose.msra.mxu0 %v495
    %662 = vmatprep.subr.bf16.mxu0 0
    %663 = vmatpush1.bf16.xpose.msra.mxu0 %v494
    %664 = vmatprep.subr.bf16.mxu0 0
    %665 = vmatpush1.bf16.xpose.msra.mxu0 %v493
    %666 = vmatprep.subr.bf16.mxu0 0
    %667 = vmatpush1.bf16.xpose.msra.mxu0 %v492
    %668 = vmatprep.subr.bf16.mxu0 0
    %669 = vmatpush1.bf16.xpose.msra.mxu0 %v491
    %670 = vmatprep.subr.bf16.mxu0 0
    %671 = vmatpush1.bf16.xpose.msra.mxu0 %v490
    %672 = vmatprep.subr.bf16.mxu0 0
    %673 = vmatpush1.bf16.xpose.msra.mxu0 %v489
    %674 = vmatprep.subr.bf16.mxu0 0
    %675 = vmatpush2.bf16.xpose.msra.mxu0 %v504
    %676 = vmatprep.subr.bf16.mxu0 0
    %677 = vmatpush2.bf16.xpose.msra.mxu0 %v503
    %678 = vmatprep.subr.bf16.mxu0 0
    %679 = vmatpush2.bf16.xpose.msra.mxu0 %v502
    %680 = vmatprep.subr.bf16.mxu0 0
    %681 = vmatpush2.bf16.xpose.msra.mxu0 %v501
    %682 = vmatprep.subr.bf16.mxu0 0
    %683 = vmatpush2.bf16.xpose.msra.mxu0 %v500
    %684 = vmatprep.subr.bf16.mxu0 0
    %685 = vmatpush2.bf16.xpose.msra.mxu0 %v499
    %686 = vmatprep.subr.bf16.mxu0 0
    %687 = vmatpush2.bf16.xpose.msra.mxu0 %v498
    %688 = vmatprep.subr.bf16.mxu0 0
    %689 = vmatpush2.bf16.xpose.msra.mxu0 %v497
    %690 = vmatprep.mubr.bf16.mxu0 0
    %691 = vmatmul.mubr.bf16.gmra.mxu0 %v184
    %v692 = vpop.f32.mrf.mxu0
    %v693 = vadd.f32 0.0, %v692
    %v694 = vpop.f32.mrf.mxu0
    %v695 = vadd.f32 0.0, %v694
    %v696 = vpop.f32.mrf.mxu0
    %v697 = vpop.f32.mrf.mxu0
    %698 = vdwg.mxu0
    %699 = vmatprep.subr.bf16.mxu0 0
    %700 = vmatpush1.bf16.xpose.msra.mxu0 %v512
    %701 = vmatprep.subr.bf16.mxu0 0
    %702 = vmatpush1.bf16.xpose.msra.mxu0 %v511
    %703 = vmatprep.subr.bf16.mxu0 0
    %704 = vmatpush1.bf16.xpose.msra.mxu0 %v510
    %705 = vmatprep.subr.bf16.mxu0 0
    %706 = vmatpush1.bf16.xpose.msra.mxu0 %v509
    %707 = vmatprep.subr.bf16.mxu0 0
    %708 = vmatpush1.bf16.xpose.msra.mxu0 %v508
    %709 = vmatprep.subr.bf16.mxu0 0
    %710 = vmatpush1.bf16.xpose.msra.mxu0 %v507
    %711 = vmatprep.subr.bf16.mxu0 0
    %712 = vmatpush1.bf16.xpose.msra.mxu0 %v506
    %713 = vmatprep.subr.bf16.mxu0 0
    %714 = vmatpush1.bf16.xpose.msra.mxu0 %v505
    %715 = vmatprep.subr.bf16.mxu0 0
    %716 = vmatpush2.bf16.xpose.msra.mxu0 %v520
    %717 = vmatprep.subr.bf16.mxu0 0
    %718 = vmatpush2.bf16.xpose.msra.mxu0 %v519
    %719 = vmatprep.subr.bf16.mxu0 0
    %720 = vmatpush2.bf16.xpose.msra.mxu0 %v518
    %721 = vmatprep.subr.bf16.mxu0 0
    %722 = vmatpush2.bf16.xpose.msra.mxu0 %v517
    %723 = vmatprep.subr.bf16.mxu0 0
    %724 = vmatpush2.bf16.xpose.msra.mxu0 %v516
    %725 = vmatprep.subr.bf16.mxu0 0
    %726 = vmatpush2.bf16.xpose.msra.mxu0 %v515
    %727 = vmatprep.subr.bf16.mxu0 0
    %728 = vmatpush2.bf16.xpose.msra.mxu0 %v514
    %729 = vmatprep.subr.bf16.mxu0 0
    %730 = vmatpush2.bf16.xpose.msra.mxu0 %v513
    %731 = vmatprep.mubr.bf16.mxu0 0
    %732 = vmatmul.mubr.bf16.gmra.mxu0 %v184
    %v733 = vpop.f32.mrf.mxu0
    %v734 = vadd.f32 0.0, %v733
    %v735 = vpop.f32.mrf.mxu0
    %v736 = vadd.f32 0.0, %v735
    %v737 = vpop.f32.mrf.mxu0
    %v738 = vpop.f32.mrf.mxu0
    %739 = vdwg.mxu0
    %740 = vmatprep.subr.bf16.mxu0 0
    %741 = vmatpush1.bf16.xpose.msra.mxu0 %v528
    %742 = vmatprep.subr.bf16.mxu0 0
    %743 = vmatpush1.bf16.xpose.msra.mxu0 %v527
    %744 = vmatprep.subr.bf16.mxu0 0
    %745 = vmatpush1.bf16.xpose.msra.mxu0 %v526
    %746 = vmatprep.subr.bf16.mxu0 0
    %747 = vmatpush1.bf16.xpose.msra.mxu0 %v525
    %748 = vmatprep.subr.bf16.mxu0 0
    %749 = vmatpush1.bf16.xpose.msra.mxu0 %v524
    %750 = vmatprep.subr.bf16.mxu0 0
    %751 = vmatpush1.bf16.xpose.msra.mxu0 %v523
    %752 = vmatprep.subr.bf16.mxu0 0
    %753 = vmatpush1.bf16.xpose.msra.mxu0 %v522
    %754 = vmatprep.subr.bf16.mxu0 0
    %755 = vmatpush1.bf16.xpose.msra.mxu0 %v521
    %756 = vmatprep.subr.bf16.mxu0 0
    %757 = vmatpush2.bf16.xpose.msra.mxu0 %v536
    %758 = vmatprep.subr.bf16.mxu0 0
    %759 = vmatpush2.bf16.xpose.msra.mxu0 %v535
    %760 = vmatprep.subr.bf16.mxu0 0
    %761 = vmatpush2.bf16.xpose.msra.mxu0 %v534
    %762 = vmatprep.subr.bf16.mxu0 0
    %763 = vmatpush2.bf16.xpose.msra.mxu0 %v533
    %764 = vmatprep.subr.bf16.mxu0 0
    %765 = vmatpush2.bf16.xpose.msra.mxu0 %v532
    %766 = vmatprep.subr.bf16.mxu0 0
    %767 = vmatpush2.bf16.xpose.msra.mxu0 %v531
    %768 = vmatprep.subr.bf16.mxu0 0
    %769 = vmatpush2.bf16.xpose.msra.mxu0 %v530
    %770 = vmatprep.subr.bf16.mxu0 0
    %771 = vmatpush2.bf16.xpose.msra.mxu0 %v529
    %772 = vmatprep.mubr.bf16.mxu0 0
    %773 = vmatmul.mubr.bf16.gmra.mxu0 %v184
    %v774 = vpop.f32.mrf.mxu0
    %v775 = vadd.f32 0.0, %v774
    %v776 = vpop.f32.mrf.mxu0
    %v777 = vadd.f32 0.0, %v776
    %v778 = vpop.f32.mrf.mxu0
    %v779 = vpop.f32.mrf.mxu0
    %780 = vdwg.mxu0
    %781 = vmatprep.subr.bf16.mxu0 0
    %782 = vmatpush1.bf16.xpose.msra.mxu0 %v544
    %783 = vmatprep.subr.bf16.mxu0 0
    %784 = vmatpush1.bf16.xpose.msra.mxu0 %v543
    %785 = vmatprep.subr.bf16.mxu0 0
    %786 = vmatpush1.bf16.xpose.msra.mxu0 %v542
    %787 = vmatprep.subr.bf16.mxu0 0
    %788 = vmatpush1.bf16.xpose.msra.mxu0 %v541
    %789 = vmatprep.subr.bf16.mxu0 0
    %790 = vmatpush1.bf16.xpose.msra.mxu0 %v540
    %791 = vmatprep.subr.bf16.mxu0 0
    %792 = vmatpush1.bf16.xpose.msra.mxu0 %v539
    %793 = vmatprep.subr.bf16.mxu0 0
    %794 = vmatpush1.bf16.xpose.msra.mxu0 %v538
    %795 = vmatprep.subr.bf16.mxu0 0
    %796 = vmatpush1.bf16.xpose.msra.mxu0 %v537
    %797 = vmatprep.subr.bf16.mxu0 0
    %798 = vmatpush2.bf16.xpose.msra.mxu0 0
    %799 = vmatprep.subr.bf16.mxu0 0
    %800 = vmatpush2.bf16.xpose.msra.mxu0 0
    %801 = vmatprep.subr.bf16.mxu0 0
    %802 = vmatpush2.bf16.xpose.msra.mxu0 0
    %803 = vmatprep.subr.bf16.mxu0 0
    %804 = vmatpush2.bf16.xpose.msra.mxu0 0
    %805 = vmatprep.subr.bf16.mxu0 0
    %806 = vmatpush2.bf16.xpose.msra.mxu0 0
    %807 = vmatprep.subr.bf16.mxu0 0
    %808 = vmatpush2.bf16.xpose.msra.mxu0 0
    %809 = vmatprep.subr.bf16.mxu0 0
    %810 = vmatpush2.bf16.xpose.msra.mxu0 0
    %811 = vmatprep.subr.bf16.mxu0 0
    %812 = vmatpush2.bf16.xpose.msra.mxu0 0
    %813 = vmatprep.mubr.bf16.mxu0 0
    %814 = vmatmul.mubr.bf16.gmra.mxu0 %v184
    %v815 = vpop.f32.mrf.mxu0
    %v816 = vadd.f32 0.0, %v815
    %v817 = vpop.f32.mrf.mxu0
    %v818 = vpop.f32.mrf.mxu0
    %v819 = vpop.f32.mrf.mxu0
    %820 = vdwg.mxu0
    %v821 = vmul.f32 %v652, 1.442695
    %v822 = vpow.pop %v821
    %v823 = vmul.f32 %v654, 1.442695
    %v824 = vpow.pop %v823
    %v825 = vmul.f32 %v693, 1.442695
    %v826 = vpow.pop %v825
    %v827 = vmul.f32 %v695, 1.442695
    %v828 = vpow.pop %v827
    %v829 = vmul.f32 %v734, 1.442695
    %v830 = vpow.pop %v829
    %v831 = vmul.f32 %v736, 1.442695
    %v832 = vpow.pop %v831
    %v833 = vmul.f32 %v775, 1.442695
    %v834 = vpow.pop %v833
    %v835 = vmul.f32 %v777, 1.442695
    %v836 = vpow.pop %v835
    %v837 = vmul.f32 %v816, 1.442695
    %v838 = vpow.pop %v837
    %v839 = vadd.f32 %v822, %v824
    %v840 = vadd.f32 %v839, %v826
    %v841 = vadd.f32 %v840, %v828
    %v842 = vadd.f32 %v841, %v830
    %v843 = vadd.f32 %v842, %v832
    %v844 = vadd.f32 %v843, %v834
    %v845 = vadd.f32 %v844, %v836
    %v846 = vadd.f32 %v845, %v838
    %847 = vadd.xlane.f32.xlu0 %v846
    %v848 = vpop.xlane.xlu0 %847
    %v849 = vsub.f32 %v848, 102.0
    %v850 = vadd.f32 %v183, %v849
    %v851 = vlog2.pop %v850
    %v852 = vmul.f32 %v851, 0.6931472
    %v853 = vlaneseq
    %v854 = vand.u32 %v853, 127
    %v855 = vadd.s32 %v854, 128
    %v856 = vadd.s32 %v854, 256
    %v857 = vadd.s32 %v854, 384
    %v858 = vadd.s32 %v854, 512
    %v859 = vadd.s32 %v854, 640
    %v860 = vadd.s32 %v854, 768
    %v861 = vadd.s32 %v854, 896
    %v862 = vadd.s32 %v854, 1024
    %v863 = vmul.u32 %v21, 150
    %864 = vset.pattern.permute.xlu0 0
    %865 = vperm.xlu0 %864, %v863
    %v866 = vpop.permute.xlu0 %865
    %vm867 = vcmp.ge.s32.totalorder %v854, %v866
    %vm868 = vcmp.ge.s32.totalorder %v855, %v866
    %vm869 = vcmp.ge.s32.totalorder %v856, %v866
    %vm870 = vcmp.ge.s32.totalorder %v857, %v866
    %vm871 = vcmp.ge.s32.totalorder %v858, %v866
    %vm872 = vcmp.ge.s32.totalorder %v859, %v866
    %vm873 = vcmp.ge.s32.totalorder %v860, %v866
    %vm874 = vcmp.ge.s32.totalorder %v861, %v866
    %vm875 = vcmp.ge.s32.totalorder %v862, %v866
    %v876 = vadd.s32 %v863, 150
    %877 = vset.pattern.permute.xlu0 0
    %878 = vperm.xlu0 %877, %v876
    %v879 = vpop.permute.xlu0 %878
    %vm880 = vcmp.lt.s32.totalorder %v854, %v879
    %vm881 = vcmp.lt.s32.totalorder %v855, %v879
    %vm882 = vcmp.lt.s32.totalorder %v856, %v879
    %vm883 = vcmp.lt.s32.totalorder %v857, %v879
    %vm884 = vcmp.lt.s32.totalorder %v858, %v879
    %vm885 = vcmp.lt.s32.totalorder %v859, %v879
    %vm886 = vcmp.lt.s32.totalorder %v860, %v879
    %vm887 = vcmp.lt.s32.totalorder %v861, %v879
    %vm888 = vcmp.lt.s32.totalorder %v862, %v879
    %vm889 = vmand %vm867, %vm880
    %vm890 = vmand %vm868, %vm881
    %vm891 = vmand %vm869, %vm882
    %vm892 = vmand %vm870, %vm883
    %vm893 = vmand %vm871, %vm884
    %vm894 = vmand %vm872, %vm885
    %vm895 = vmand %vm873, %vm886
    %vm896 = vmand %vm874, %vm887
    %vm897 = vmand %vm875, %vm888
    %v898 = vsel %vm889, %v652, 0.0
    %v899 = vsel %vm890, %v654, 0.0
    %v900 = vsel %vm891, %v693, 0.0
    %v901 = vsel %vm892, %v695, 0.0
    %v902 = vsel %vm893, %v734, 0.0
    %v903 = vsel %vm894, %v736, 0.0
    %v904 = vsel %vm895, %v775, 0.0
    %v905 = vsel %vm896, %v777, 0.0
    %v906 = vsel %vm897, %v816, 0.0
    %v907 = vadd.f32 %v898, %v899
    %v908 = vadd.f32 %v907, %v900
    %v909 = vadd.f32 %v908, %v901
    %v910 = vadd.f32 %v909, %v902
    %v911 = vadd.f32 %v910, %v903
    %v912 = vadd.f32 %v911, %v904
    %v913 = vadd.f32 %v912, %v905
    %v914 = vadd.f32 %v913, %v906
    %915 = vadd.xlane.f32.xlu0 %v914
    %v916 = vpop.xlane.xlu0 %915
    %v917 = vadd.f32 %v181, %v916
    %v918 = vmul.f32 %v917, 0.0066225166
    %v919 = vsub.f32 %v852, %v918
    %v920 = vlaneseq
    %v921 = vshrl.u32 %v920, 7
    %vm922 = vcmp.lt.s32.totalorder %v921, 2
    %v923 = vsel %vm922, %v919, 0.0
    %v924 = vrot.slane %v923, 4
    %v925 = vadd.f32 %v923, %v924
    %v926 = vrot.slane %v925, 2
    %v927 = vadd.f32 %v925, %v926
    %v928 = vrot.slane %v927, 1
    %v929 = vadd.f32 %v927, %v928
    %v930 = vmul.f32 %v929, 0.5
    %vm931 = vcmask 0
    %932 = vst.msk [vmem:[#allocation2] sm:$0x1] %vm931, %v930
    // Predicated region
    $region18: #{pgc_forward.1} parent=1 // pred_check
      _
    $region19: #{pgc_forward.1} parent=1 // pred_check_branch
      %934 = sbr.rel (0) target = $region21
    $region20: #{pgc_forward.1} parent=1 // pred_region
      %s936 = ssub.s32 16, 16
      %937 = vsyncadd [#allocation3], %s936
      %s939 = sshll.u32 [#allocation2], 4
      %s940 = int_to_ptr.vmem [resolvable:$true] %s939
      %942 = dma.vmem_to_hbm [thread:$0]  %s940, 16, %s4, [#allocation3]
    $region21: #{pgc_forward.1} parent=1 // pred_fallthru
      _
    // Predicated region
    $region22: #{pgc_forward.1} parent=1 // pred_check
      _
    $region23: #{pgc_forward.1} parent=1 // pred_check_branch
      %944 = sbr.rel (0) target = $region25
    $region24: #{pgc_forward.1} parent=1 // pred_region
      %945 = dma.done [#allocation3], 16
    $region25: #{pgc_forward.1} parent=1 // pred_fallthru
      _
    %946 = vsyncpa [#allocation3], 1

</llo_original>
